<compile_context>
chip_gen: v6e
topology: v6e:2x2x1
jax: 0.10.0
libtpu: 0.0.40
codegen_flags: <defaults>
</compile_context>

<pallas_src>
import math
from functools import partial

import jax
import jax.numpy as jnp
from jax import lax
from jax.experimental import pallas as pl
from jax.experimental.pallas import tpu as pltpu

COUT_PAD = 8  # pad output channels to one full sublane tile


def conv_transpose_mm_kernel(p_ref, w_ref, b_ref, o_ref):
    """p_ref: (KKC, L_TILE)       compute_dtype im2col patches (lane-dense last dim)
       w_ref: (COUT_PAD, KKC)     compute_dtype flattened, flipped weights (zero-padded rows)
       b_ref: (COUT_PAD, 1)       f32 bias (zero-padded rows)
       o_ref: (COUT_PAD, L_TILE)  f32 output (lane-dense, fully unmasked stores)
    """
    o_ref[...] = (
        jnp.dot(w_ref[...], p_ref[...], preferred_element_type=jnp.float32)
        + b_ref[...]
    )


def prepare_conv_transpose_params(weight, bias, compute_dtype=jnp.bfloat16):
    """Hoisted (call once): flip + transpose + flatten + cast weights, pad bias.
    weight: (Cin, Cout, K, K) PyTorch ConvTranspose2d layout; bias: (Cout,)."""
    Cin, Cout, K, _ = weight.shape
    KKC = Cin * K * K
    # ConvTranspose2d (stride=1) == full correlation with the spatially flipped kernel.
    # Channel ordering (ci, kh, kw) matches lax.conv_general_dilated_patches.
    w_rot = jnp.flip(weight, axis=(2, 3))                              # (Cin, Cout, K, K)
    w_mat = jnp.transpose(w_rot, (1, 0, 2, 3)).reshape(Cout, KKC)      # (Cout, KKC)
    w_pad = jnp.zeros((COUT_PAD, KKC), compute_dtype).at[:Cout].set(
        w_mat.astype(compute_dtype))
    b_pad = jnp.zeros((COUT_PAD, 1), jnp.float32).at[:Cout, 0].set(
        bias.astype(jnp.float32))
    return w_pad, b_pad


def _largest_divisor_leq(n, cap):
    d = min(n, cap)
    while n % d:
        d -= 1
    return d


def conv_transpose2d_pallas(x, w_pad, b_pad, *, cout, K=3,
                            compute_dtype=jnp.bfloat16):
    """x: (N, Cin, H, W) f32 -> (N, cout, H+K-1, W+K-1) f32 (stride=1, padding=0)."""
    N, Cin, H, W = x.shape
    Hout, Wout = H + K - 1, W + K - 1
    KKC = Cin * K * K

    # Pad Hout so Hout_pad * Wout is a multiple of 128 (lane-dense, unmasked vld/vst).
    # The padding is folded into the patch-extraction conv itself (extra bottom rows
    # of zeros), so there is no separate wrapper pad/materialization.
    m = 128 // math.gcd(Wout, 128)
    Hout_pad = ((Hout + m - 1) // m) * m
    if Hout_pad > 2 * Hout:           # guard against pathological blow-up
        Hout_pad = Hout
    HWp = Hout_pad * Wout

    # Single fused im2col op. Cast the tiny input to compute_dtype BEFORE the 9x
    # expansion so the dominant patch DMA is halved (bf16). Output layout CNHW puts
    # the KKC reduction dim first -> batch folds onto the lane axis with a free reshape.
    xc = x.astype(compute_dtype)
    patches = lax.conv_general_dilated_patches(
        xc,
        filter_shape=(K, K),
        window_strides=(1, 1),
        padding=((K - 1, K - 1 + (Hout_pad - Hout)), (K - 1, K - 1)),
        dimension_numbers=("NCHW", "OIHW", "CNHW"),
    )                                            # (KKC, N, Hout_pad, Wout), order (ci,kh,kw)
    lanes = N * HWp
    patches = patches.reshape(KKC, lanes)        # contiguous reshape, lane-dense last dim

    # Grid over the folded (batch * HW) lane axis; for N >= 2 this gives both v7x
    # TensorCores work. Lane tile capped so 2x-buffered blocks stay well under the
    # 32 MiB scoped VMEM default on v7x (b_tile<=16 -> ~7 MiB of patch buffers).
    b_tile = _largest_divisor_leq(N, 16)
    l_tile = b_tile * HWp
    grid = (lanes // l_tile,)

    out = pl.pallas_call(
        conv_transpose_mm_kernel,
        out_shape=jax.ShapeDtypeStruct((COUT_PAD, lanes), jnp.float32),
        grid=grid,
        in_specs=[
            pl.BlockSpec((KKC, l_tile), lambda j: (0, j)),
            pl.BlockSpec((COUT_PAD, KKC), lambda j: (0, 0)),
            pl.BlockSpec((COUT_PAD, 1), lambda j: (0, 0)),
        ],
        out_specs=pl.BlockSpec((COUT_PAD, l_tile), lambda j: (0, j)),
        compiler_params=pltpu.CompilerParams(dimension_semantics=("parallel",)),
    )(patches, w_pad, b_pad)

    # Strip channel / spatial padding and restore NCHW in the wrapper (tiny slice).
    out = out.reshape(COUT_PAD, N, Hout_pad, Wout)[:cout, :, :Hout, :]
    return jnp.transpose(out, (1, 0, 2, 3))


@partial(jax.jit, static_argnames=("cout",))
def model_forward(x, w_pad, b_pad, cout=3):
    v1 = conv_transpose2d_pallas(x, w_pad, b_pad, cout=cout)   # (N, 3, H+2, W+2)
    # torch.reshape is a raw row-major reshape on contiguous data.
    v2 = jnp.reshape(v1, (-1, 3))   # closest valid equivalent of the impossible (8000, 3)
    return v1, v2


if __name__ == "__main__":
    key = jax.random.PRNGKey(0)
    kx, kw, kb = jax.random.split(key, 3)

    Cin, Cout, K = 32, 3, 3
    x1 = jax.random.normal(kx, (1, Cin, 20, 10), dtype=jnp.float32)

    # Deterministic parameter init (PyTorch-like uniform scale)
    bound = 1.0 / jnp.sqrt(jnp.float32(Cout * K * K))
    weight = jax.random.uniform(kw, (Cin, Cout, K, K), jnp.float32, -bound, bound)
    bias = jax.random.uniform(kb, (Cout,), jnp.float32, -bound, bound)

    # Hoisted once: weight flip/flatten/cast + bias pad (not re-run per forward).
    w_pad, b_pad = prepare_conv_transpose_params(weight, bias, compute_dtype=jnp.bfloat16)

    v1, v2 = model_forward(x1, w_pad, b_pad, cout=Cout)
    jax.block_until_ready(v2)

    # Correctness vs f32 XLA reference (full conv with rotated kernel); tolerance
    # covers the explicit bf16 MXU operand cast (f32 accumulation).
    w_rot = jnp.transpose(jnp.flip(weight, axis=(2, 3)), (1, 0, 2, 3))   # (Cout, Cin, K, K)
    ref = lax.conv_general_dilated(
        x1, w_rot, window_strides=(1, 1),
        padding=[(K - 1, K - 1), (K - 1, K - 1)],
        dimension_numbers=("NCHW", "OIHW", "NCHW"),
    ) + bias[None, :, None, None]

    assert v1.shape == (1, Cout, 22, 12)
    assert v2.shape == (1 * Cout * 22 * 12 // 3, 3)
    assert jnp.allclose(v1, ref, atol=3e-2, rtol=3e-2)

    print("KERNEL_OK")
</pallas_src>

<mosaic_0001>
module attributes {stable_mosaic.version = 11 : i64} {
  func.func @conv_transpose_mm_kernel(%arg0: i32, %arg1: memref<288x384xbf16, #tpu.memory_space<vmem>>, %arg2: memref<8x288xbf16, #tpu.memory_space<vmem>>, %arg3: memref<8x1xf32, #tpu.memory_space<vmem>>, %arg4: memref<8x384xf32, #tpu.memory_space<vmem>>) attributes {dimension_semantics = [#tpu.dimension_semantics<parallel>], iteration_bounds = array<i64: 1>, scalar_prefetch = 0 : i64, scratch_operands = 0 : i64, tpu.core_type = #tpu.core_type<tc>, window_params = [{transform_indices = @transform_0, window_bounds = array<i64: 288, 384>}, {pipeline_mode = #tpu.pipeline_mode<synchronous>, transform_indices = @transform_1, window_bounds = array<i64: 8, 288>}, {pipeline_mode = #tpu.pipeline_mode<synchronous>, transform_indices = @transform_2, window_bounds = array<i64: 8, 1>}, {transform_indices = @transform_3, window_bounds = array<i64: 8, 384>}]} {
    %c0 = arith.constant 0 : index
    %c0_0 = arith.constant 0 : index
    %0 = vector.load %arg2[%c0, %c0_0] : memref<8x288xbf16, #tpu.memory_space<vmem>>, vector<8x288xbf16>
    %c0_1 = arith.constant 0 : index
    %c0_2 = arith.constant 0 : index
    %1 = vector.load %arg1[%c0_1, %c0_2] : memref<288x384xbf16, #tpu.memory_space<vmem>>, vector<288x384xbf16>
    %cst = arith.constant dense<0.000000e+00> : vector<8x384xf32>
    %2 = tpu.matmul %0, %1, %cst {dimension_numbers = #tpu.dot_dimension_numbers<[1], [0], [0], [1], [0, 0, 1, 1], [], []>} : vector<8x288xbf16>, vector<288x384xbf16>, vector<8x384xf32> -> vector<8x384xf32>
    %c0_3 = arith.constant 0 : index
    %c0_4 = arith.constant 0 : index
    %3 = vector.load %arg3[%c0_3, %c0_4] : memref<8x1xf32, #tpu.memory_space<vmem>>, vector<8x1xf32>
    %4 = vector.broadcast %3 : vector<8x1xf32> to vector<8x384xf32>
    %5 = arith.addf %2, %4 : vector<8x384xf32>
    %c0_5 = arith.constant 0 : index
    %c0_6 = arith.constant 0 : index
    %6 = vector.load %arg4[%c0_5, %c0_6] : memref<8x384xf32, #tpu.memory_space<vmem>>, vector<8x384xf32>
    tpu.vector_store %arg4[%c0_5, %c0_6], %5 {strides = array<i32>} : memref<8x384xf32, #tpu.memory_space<vmem>>, vector<8x384xf32>,
    return
  }
  func.func @transform_0(%arg0: i32) -> (i32, i32) {
    %c0_i32 = arith.constant 0 : i32
    %c0_i32_0 = arith.constant 0 : i32
    return %c0_i32, %arg0 : i32, i32
  }
  func.func @transform_1(%arg0: i32) -> (i32, i32) {
    %c0_i32 = arith.constant 0 : i32
    %c0_i32_0 = arith.constant 0 : i32
    %c0_i32_1 = arith.constant 0 : i32
    return %c0_i32, %c0_i32_0 : i32, i32
  }
  func.func @transform_2(%arg0: i32) -> (i32, i32) {
    %c0_i32 = arith.constant 0 : i32
    %c0_i32_0 = arith.constant 0 : i32
    %c0_i32_1 = arith.constant 0 : i32
    return %c0_i32, %c0_i32_0 : i32, i32
  }
  func.func @transform_3(%arg0: i32) -> (i32, i32) {
    %c0_i32 = arith.constant 0 : i32
    %c0_i32_0 = arith.constant 0 : i32
    return %c0_i32, %arg0 : i32, i32
  }
}

</mosaic_0001>

<llo_original>
// kernel: model_forward.1
$region0: #{model_forward.1}
  #allocation0 [shape = 'u32[]', space=smem, size = 0x4, offset = 0x4, fixed_abs, tag = 'smem constant byte address 0x4 - core index']
  #allocation1 [shape = 'u32[144,128]{1,0:T(1,128)}', space=vmem, size = 0x12000, scoped, tag = 'internal scratch']
  %s0 = inlined_call_operand.vmem [shape: bf16[288,384], index: 0, kind: input, shape index: {}]
  %s1 = inlined_call_operand.vmem [shape: bf16[8,288], index: 1, kind: input, shape index: {}]
  %s2 = inlined_call_operand.vmem [shape: f32[8,1], index: 2, kind: input, shape index: {}]
  %s3 = inlined_call_operand.vmem [shape: f32[8,384], index: 3, kind: output, shape index: {}]
  %s4 = sld [smem:[#allocation0]]
  $region22: #{model_forward.1} parent=0
    _
  %s6 = ssub.s32 1, %s4
  %s7 = scalar_select 0, %s6, %s4
  // Predicated region
  $region2: #{model_forward.1} parent=0 // pred_check
    _
  $region3: #{model_forward.1} parent=0 // pred_check_branch
    %9 = sbr.rel (0) target = $region5
  $region4: #{model_forward.1} parent=0 // pred_region
    _
  $region5: #{model_forward.1} parent=0 // pred_fallthru
    _
  // Predicated region
  $region6: #{model_forward.1} parent=0 // pred_check
    _
  $region7: #{model_forward.1} parent=0 // pred_check_branch
    %11 = sbr.rel (0) target = $region9
  $region8: #{model_forward.1} parent=0 // pred_region
    _
  $region9: #{model_forward.1} parent=0 // pred_fallthru
    _
  // Predicated region
  $region10: #{model_forward.1} parent=0 // pred_check
    _
  $region11: #{model_forward.1} parent=0 // pred_check_branch
    %13 = sbr.rel (0) target = $region13
  $region12: #{model_forward.1} parent=0 // pred_region
    _
  $region13: #{model_forward.1} parent=0 // pred_fallthru
    _
  %v15 = vld [vmem:[%s1] sm:$0xff]
  %v16 = vld [vmem:[%s1 + $0x8] sm:$0xf]
  %v17 = vld [vmem:[%s0] sm:$0xff]
  %v18 = vld [vmem:[%s0 + $0x8] sm:$0xf]
  %v19 = vld [vmem:[%s0 + $0xc] sm:$0xff]
  %v20 = vld [vmem:[%s0 + $0x14] sm:$0xf]
  %v21 = vld [vmem:[%s0 + $0x18] sm:$0xff]
  %v22 = vld [vmem:[%s0 + $0x20] sm:$0xf]
  %v23 = vld [vmem:[%s0 + $0x24] sm:$0xff]
  %v24 = vld [vmem:[%s0 + $0x2c] sm:$0xf]
  %v25 = vld [vmem:[%s0 + $0x30] sm:$0xff]
  %v26 = vld [vmem:[%s0 + $0x38] sm:$0xf]
  %v27 = vld [vmem:[%s0 + $0x3c] sm:$0xff]
  %v28 = vld [vmem:[%s0 + $0x44] sm:$0xf]
  %v29 = vld [vmem:[%s0 + $0x48] sm:$0xff]
  %v30 = vld [vmem:[%s0 + $0x50] sm:$0xf]
  %v31 = vld [vmem:[%s0 + $0x54] sm:$0xff]
  %v32 = vld [vmem:[%s0 + $0x5c] sm:$0xf]
  %v33 = vld [vmem:[%s0 + $0x60] sm:$0xff]
  %v34 = vld [vmem:[%s0 + $0x68] sm:$0xf]
  %v35 = vld [vmem:[%s0 + $0x6c] sm:$0xff]
  %v36 = vld [vmem:[%s0 + $0x74] sm:$0xf]
  %v37 = vld [vmem:[%s0 + $0x78] sm:$0xff]
  %v38 = vld [vmem:[%s0 + $0x80] sm:$0xf]
  %v39 = vld [vmem:[%s0 + $0x84] sm:$0xff]
  %v40 = vld [vmem:[%s0 + $0x8c] sm:$0xf]
  %v41 = vld [vmem:[%s0 + $0x90] sm:$0xff]
  %v42 = vld [vmem:[%s0 + $0x98] sm:$0xf]
  %v43 = vld [vmem:[%s0 + $0x9c] sm:$0xff]
  %v44 = vld [vmem:[%s0 + $0xa4] sm:$0xf]
  %v45 = vld [vmem:[%s0 + $0xa8] sm:$0xff]
  %v46 = vld [vmem:[%s0 + $0xb0] sm:$0xf]
  %v47 = vld [vmem:[%s0 + $0xb4] sm:$0xff]
  %v48 = vld [vmem:[%s0 + $0xbc] sm:$0xf]
  %v49 = vld [vmem:[%s0 + $0xc0] sm:$0xff]
  %v50 = vld [vmem:[%s0 + $0xc8] sm:$0xf]
  %v51 = vld [vmem:[%s0 + $0xcc] sm:$0xff]
  %v52 = vld [vmem:[%s0 + $0xd4] sm:$0xf]
  %v53 = vld [vmem:[%s0 + $0xd8] sm:$0xff]
  %v54 = vld [vmem:[%s0 + $0xe0] sm:$0xf]
  %v55 = vld [vmem:[%s0 + $0xe4] sm:$0xff]
  %v56 = vld [vmem:[%s0 + $0xec] sm:$0xf]
  %v57 = vld [vmem:[%s0 + $0xf0] sm:$0xff]
  %v58 = vld [vmem:[%s0 + $0xf8] sm:$0xf]
  %v59 = vld [vmem:[%s0 + $0xfc] sm:$0xff]
  %v60 = vld [vmem:[%s0 + $0x104] sm:$0xf]
  %v61 = vld [vmem:[%s0 + $0x108] sm:$0xff]
  %v62 = vld [vmem:[%s0 + $0x110] sm:$0xf]
  %v63 = vld [vmem:[%s0 + $0x114] sm:$0xff]
  %v64 = vld [vmem:[%s0 + $0x11c] sm:$0xf]
  %v65 = vld [vmem:[%s0 + $0x120] sm:$0xff]
  %v66 = vld [vmem:[%s0 + $0x128] sm:$0xf]
  %v67 = vld [vmem:[%s0 + $0x12c] sm:$0xff]
  %v68 = vld [vmem:[%s0 + $0x134] sm:$0xf]
  %v69 = vld [vmem:[%s0 + $0x138] sm:$0xff]
  %v70 = vld [vmem:[%s0 + $0x140] sm:$0xf]
  %v71 = vld [vmem:[%s0 + $0x144] sm:$0xff]
  %v72 = vld [vmem:[%s0 + $0x14c] sm:$0xf]
  %v73 = vld [vmem:[%s0 + $0x150] sm:$0xff]
  %v74 = vld [vmem:[%s0 + $0x158] sm:$0xf]
  %v75 = vld [vmem:[%s0 + $0x15c] sm:$0xff]
  %v76 = vld [vmem:[%s0 + $0x164] sm:$0xf]
  %v77 = vld [vmem:[%s0 + $0x168] sm:$0xff]
  %v78 = vld [vmem:[%s0 + $0x170] sm:$0xf]
  %v79 = vld [vmem:[%s0 + $0x174] sm:$0xff]
  %v80 = vld [vmem:[%s0 + $0x17c] sm:$0xf]
  %v81 = vld [vmem:[%s0 + $0x180] sm:$0xff]
  %v82 = vld [vmem:[%s0 + $0x188] sm:$0xf]
  %v83 = vld [vmem:[%s0 + $0x18c] sm:$0xff]
  %v84 = vld [vmem:[%s0 + $0x194] sm:$0xf]
  %v85 = vld [vmem:[%s0 + $0x198] sm:$0xff]
  %v86 = vld [vmem:[%s0 + $0x1a0] sm:$0xf]
  %v87 = vld [vmem:[%s0 + $0x1a4] sm:$0xff]
  %v88 = vld [vmem:[%s0 + $0x1ac] sm:$0xf]
  %v89 = vld [vmem:[%s2] sm:$0xff]
  %91 = vset.pattern.permute.xlu0 0
  %92 = vperm.xlu0 %91, %v89
  %v93 = vpop.permute.xlu0 %92
  %v97 = vunpack.c.l.b16 %v15
  %v98 = vunpack.c.h.b16 %v15
  %v99 = vunpack.c.l.b16 %v16
  %v100 = vpack.c.b16 %v97, %v97
  %v101 = vpack.c.b16 %v98, %v98
  %v102 = vpack.c.b16 %v99, %v99
  %v177 = vunpack.c.l.b16 %v17
  %v178 = vunpack.c.h.b16 %v17
  %v179 = vunpack.c.l.b16 %v18
  %v180 = vunpack.c.l.b16 %v19
  %v181 = vunpack.c.h.b16 %v19
  %v182 = vunpack.c.l.b16 %v20
  %v183 = vunpack.c.l.b16 %v21
  %v184 = vunpack.c.h.b16 %v21
  %v185 = vunpack.c.l.b16 %v22
  %v186 = vunpack.c.l.b16 %v23
  %v187 = vunpack.c.h.b16 %v23
  %v188 = vunpack.c.l.b16 %v24
  %v189 = vunpack.c.l.b16 %v25
  %v190 = vunpack.c.h.b16 %v25
  %v191 = vunpack.c.l.b16 %v26
  %v192 = vunpack.c.l.b16 %v27
  %v193 = vunpack.c.h.b16 %v27
  %v194 = vunpack.c.l.b16 %v28
  %v195 = vunpack.c.l.b16 %v29
  %v196 = vunpack.c.h.b16 %v29
  %v197 = vunpack.c.l.b16 %v30
  %v198 = vunpack.c.l.b16 %v31
  %v199 = vunpack.c.h.b16 %v31
  %v200 = vunpack.c.l.b16 %v32
  %v201 = vunpack.c.l.b16 %v33
  %v202 = vunpack.c.h.b16 %v33
  %v203 = vunpack.c.l.b16 %v34
  %v204 = vunpack.c.l.b16 %v35
  %v205 = vunpack.c.h.b16 %v35
  %v206 = vunpack.c.l.b16 %v36
  %v207 = vunpack.c.l.b16 %v37
  %v208 = vunpack.c.h.b16 %v37
  %v209 = vunpack.c.l.b16 %v38
  %v210 = vunpack.c.l.b16 %v39
  %v211 = vunpack.c.h.b16 %v39
  %v212 = vunpack.c.l.b16 %v40
  %v213 = vunpack.c.l.b16 %v41
  %v214 = vunpack.c.h.b16 %v41
  %v215 = vunpack.c.l.b16 %v42
  %v216 = vunpack.c.l.b16 %v43
  %v217 = vunpack.c.h.b16 %v43
  %v218 = vunpack.c.l.b16 %v44
  %v219 = vunpack.c.l.b16 %v45
  %v220 = vunpack.c.h.b16 %v45
  %v221 = vunpack.c.l.b16 %v46
  %v222 = vunpack.c.l.b16 %v47
  %v223 = vunpack.c.h.b16 %v47
  %v224 = vunpack.c.l.b16 %v48
  %v225 = vunpack.c.l.b16 %v49
  %v226 = vunpack.c.h.b16 %v49
  %v227 = vunpack.c.l.b16 %v50
  %v228 = vunpack.c.l.b16 %v51
  %v229 = vunpack.c.h.b16 %v51
  %v230 = vunpack.c.l.b16 %v52
  %v231 = vunpack.c.l.b16 %v53
  %v232 = vunpack.c.h.b16 %v53
  %v233 = vunpack.c.l.b16 %v54
  %v234 = vunpack.c.l.b16 %v55
  %v235 = vunpack.c.h.b16 %v55
  %v236 = vunpack.c.l.b16 %v56
  %v237 = vunpack.c.l.b16 %v57
  %v238 = vunpack.c.h.b16 %v57
  %v239 = vunpack.c.l.b16 %v58
  %v240 = vunpack.c.l.b16 %v59
  %v241 = vunpack.c.h.b16 %v59
  %v242 = vunpack.c.l.b16 %v60
  %v243 = vunpack.c.l.b16 %v61
  %v244 = vunpack.c.h.b16 %v61
  %v245 = vunpack.c.l.b16 %v62
  %v246 = vunpack.c.l.b16 %v63
  %v247 = vunpack.c.h.b16 %v63
  %v248 = vunpack.c.l.b16 %v64
  %v249 = vunpack.c.l.b16 %v65
  %v250 = vunpack.c.h.b16 %v65
  %v251 = vunpack.c.l.b16 %v66
  %v252 = vunpack.c.l.b16 %v67
  %v253 = vunpack.c.h.b16 %v67
  %v254 = vunpack.c.l.b16 %v68
  %v255 = vunpack.c.l.b16 %v69
  %v256 = vunpack.c.h.b16 %v69
  %v257 = vunpack.c.l.b16 %v70
  %v258 = vunpack.c.l.b16 %v71
  %v259 = vunpack.c.h.b16 %v71
  %v260 = vunpack.c.l.b16 %v72
  %v261 = vunpack.c.l.b16 %v73
  %v262 = vunpack.c.h.b16 %v73
  %v263 = vunpack.c.l.b16 %v74
  %v264 = vunpack.c.l.b16 %v75
  %v265 = vunpack.c.h.b16 %v75
  %v266 = vunpack.c.l.b16 %v76
  %v267 = vunpack.c.l.b16 %v77
  %v268 = vunpack.c.h.b16 %v77
  %v269 = vunpack.c.l.b16 %v78
  %v270 = vunpack.c.l.b16 %v79
  %v271 = vunpack.c.h.b16 %v79
  %v272 = vunpack.c.l.b16 %v80
  %v273 = vunpack.c.l.b16 %v81
  %v274 = vunpack.c.h.b16 %v81
  %v275 = vunpack.c.l.b16 %v82
  %v276 = vunpack.c.l.b16 %v83
  %v277 = vunpack.c.h.b16 %v83
  %v278 = vunpack.c.l.b16 %v84
  %v279 = vunpack.c.l.b16 %v85
  %v280 = vunpack.c.h.b16 %v85
  %v281 = vunpack.c.l.b16 %v86
  %v282 = vunpack.c.l.b16 %v87
  %v283 = vunpack.c.h.b16 %v87
  %v284 = vunpack.c.l.b16 %v88
  %v285 = vpack.c.b16 %v180, %v177
  %v286 = vpack.c.b16 %v181, %v178
  %v287 = vpack.c.b16 %v182, %v179
  %v288 = vpack.c.b16 %v186, %v183
  %v289 = vpack.c.b16 %v187, %v184
  %v290 = vpack.c.b16 %v188, %v185
  %v291 = vpack.c.b16 %v192, %v189
  %v292 = vpack.c.b16 %v193, %v190
  %v293 = vpack.c.b16 %v194, %v191
  %v294 = vpack.c.b16 %v198, %v195
  %v295 = vpack.c.b16 %v199, %v196
  %v296 = vpack.c.b16 %v200, %v197
  %v297 = vpack.c.b16 %v204, %v201
  %v298 = vpack.c.b16 %v205, %v202
  %v299 = vpack.c.b16 %v206, %v203
  %v300 = vpack.c.b16 %v210, %v207
  %v301 = vpack.c.b16 %v211, %v208
  %v302 = vpack.c.b16 %v212, %v209
  %v303 = vpack.c.b16 %v216, %v213
  %v304 = vpack.c.b16 %v217, %v214
  %v305 = vpack.c.b16 %v218, %v215
  %v306 = vpack.c.b16 %v222, %v219
  %v307 = vpack.c.b16 %v223, %v220
  %v308 = vpack.c.b16 %v224, %v221
  %v309 = vpack.c.b16 %v228, %v225
  %v310 = vpack.c.b16 %v229, %v226
  %v311 = vpack.c.b16 %v230, %v227
  %v312 = vpack.c.b16 %v234, %v231
  %v313 = vpack.c.b16 %v235, %v232
  %v314 = vpack.c.b16 %v236, %v233
  %v315 = vpack.c.b16 %v240, %v237
  %v316 = vpack.c.b16 %v241, %v238
  %v317 = vpack.c.b16 %v242, %v239
  %v318 = vpack.c.b16 %v246, %v243
  %v319 = vpack.c.b16 %v247, %v244
  %v320 = vpack.c.b16 %v248, %v245
  %v321 = vpack.c.b16 %v252, %v249
  %v322 = vpack.c.b16 %v253, %v250
  %v323 = vpack.c.b16 %v254, %v251
  %v324 = vpack.c.b16 %v258, %v255
  %v325 = vpack.c.b16 %v259, %v256
  %v326 = vpack.c.b16 %v260, %v257
  %v327 = vpack.c.b16 %v264, %v261
  %v328 = vpack.c.b16 %v265, %v262
  %v329 = vpack.c.b16 %v266, %v263
  %v330 = vpack.c.b16 %v270, %v267
  %v331 = vpack.c.b16 %v271, %v268
  %v332 = vpack.c.b16 %v272, %v269
  %v333 = vpack.c.b16 %v276, %v273
  %v334 = vpack.c.b16 %v277, %v274
  %v335 = vpack.c.b16 %v278, %v275
  %v336 = vpack.c.b16 %v282, %v279
  %v337 = vpack.c.b16 %v283, %v280
  %v338 = vpack.c.b16 %v284, %v281
  %vm393 = vcmask 261120
  %v395 = vsel %vm393, %v102, 0
  %397 = vmatprep.subr.bf16.mxu0 %v307
  %398 = vmatpush1.bf16.msra.mxu0 %v306
  %399 = vmatprep.subr.bf16.mxu0 %v304
  %400 = vmatpush1.bf16.msra.mxu0 %v303
  %401 = vmatprep.subr.bf16.mxu0 %v301
  %402 = vmatpush1.bf16.msra.mxu0 %v300
  %403 = vmatprep.subr.bf16.mxu0 %v298
  %404 = vmatpush1.bf16.msra.mxu0 %v297
  %405 = vmatprep.subr.bf16.mxu0 %v295
  %406 = vmatpush1.bf16.msra.mxu0 %v294
  %407 = vmatprep.subr.bf16.mxu0 %v292
  %408 = vmatpush1.bf16.msra.mxu0 %v291
  %409 = vmatprep.subr.bf16.mxu0 %v289
  %410 = vmatpush1.bf16.msra.mxu0 %v288
  %411 = vmatprep.subr.bf16.mxu0 %v286
  %412 = vmatpush1.bf16.msra.mxu0 %v285
  %413 = vmatprep.subr.bf16.mxu0 %v331
  %414 = vmatpush2.bf16.msra.mxu0 %v330
  %415 = vmatprep.subr.bf16.mxu0 %v328
  %416 = vmatpush2.bf16.msra.mxu0 %v327
  %417 = vmatprep.subr.bf16.mxu0 %v325
  %418 = vmatpush2.bf16.msra.mxu0 %v324
  %419 = vmatprep.subr.bf16.mxu0 %v322
  %420 = vmatpush2.bf16.msra.mxu0 %v321
  %421 = vmatprep.subr.bf16.mxu0 %v319
  %422 = vmatpush2.bf16.msra.mxu0 %v318
  %423 = vmatprep.subr.bf16.mxu0 %v316
  %424 = vmatpush2.bf16.msra.mxu0 %v315
  %425 = vmatprep.subr.bf16.mxu0 %v313
  %426 = vmatpush2.bf16.msra.mxu0 %v312
  %427 = vmatprep.subr.bf16.mxu0 %v310
  %428 = vmatpush2.bf16.msra.mxu0 %v309
  %429 = vmatprep.mubr.bf16.mxu0 %v101
  %430 = vmatmul.mubr.bf16.gmra.mxu0 %v100
  %v431 = vpop.f32.mrf.mxu0
  %v432 = vadd.f32 %v93, %v431
  %v433 = vpop.f32.mrf.mxu0
  %v434 = vadd.f32 %v93, %v433
  %v435 = vpop.f32.mrf.mxu0
  %v436 = vpop.f32.mrf.mxu0
  %437 = vdwg.mxu0
  %438 = vmatprep.subr.bf16.mxu0 0
  %439 = vmatpush1.bf16.msra.mxu0 0
  %440 = vmatprep.subr.bf16.mxu0 0
  %441 = vmatpush1.bf16.msra.mxu0 0
  %442 = vmatprep.subr.bf16.mxu0 0
  %443 = vmatpush1.bf16.msra.mxu0 0
  %444 = vmatprep.subr.bf16.mxu0 0
  %445 = vmatpush1.bf16.msra.mxu0 0
  %446 = vmatprep.subr.bf16.mxu0 0
  %447 = vmatpush1.bf16.msra.mxu0 0
  %448 = vmatprep.subr.bf16.mxu0 0
  %449 = vmatpush1.bf16.msra.mxu0 0
  %450 = vmatprep.subr.bf16.mxu0 %v337
  %451 = vmatpush1.bf16.msra.mxu0 %v336
  %452 = vmatprep.subr.bf16.mxu0 %v334
  %453 = vmatpush1.bf16.msra.mxu0 %v333
  %454 = vmatprep.subr.bf16.mxu0 0
  %455 = vmatpush2.bf16.msra.mxu0 0
  %456 = vmatprep.subr.bf16.mxu0 0
  %457 = vmatpush2.bf16.msra.mxu0 0
  %458 = vmatprep.subr.bf16.mxu0 0
  %459 = vmatpush2.bf16.msra.mxu0 0
  %460 = vmatprep.subr.bf16.mxu0 0
  %461 = vmatpush2.bf16.msra.mxu0 0
  %462 = vmatprep.subr.bf16.mxu0 0
  %463 = vmatpush2.bf16.msra.mxu0 0
  %464 = vmatprep.subr.bf16.mxu0 0
  %465 = vmatpush2.bf16.msra.mxu0 0
  %466 = vmatprep.subr.bf16.mxu0 0
  %467 = vmatpush2.bf16.msra.mxu0 0
  %468 = vmatprep.subr.bf16.mxu0 0
  %469 = vmatpush2.bf16.msra.mxu0 0
  %470 = vmatprep.mubr.bf16.mxu0 0
  %471 = vmatmul.mubr.bf16.gmra.mxu0 %v395
  %v472 = vpop.f32.mrf.mxu0
  %v473 = vadd.f32 %v432, %v472
  %v474 = vpop.f32.mrf.mxu0
  %v475 = vadd.f32 %v434, %v474
  %v476 = vpop.f32.mrf.mxu0
  %v477 = vpop.f32.mrf.mxu0
  %478 = vdwg.mxu0
  %479 = vmatprep.subr.bf16.mxu0 0
  %480 = vmatpush1.bf16.msra.mxu0 %v308
  %481 = vmatprep.subr.bf16.mxu0 0
  %482 = vmatpush1.bf16.msra.mxu0 %v305
  %483 = vmatprep.subr.bf16.mxu0 0
  %484 = vmatpush1.bf16.msra.mxu0 %v302
  %485 = vmatprep.subr.bf16.mxu0 0
  %486 = vmatpush1.bf16.msra.mxu0 %v299
  %487 = vmatprep.subr.bf16.mxu0 0
  %488 = vmatpush1.bf16.msra.mxu0 %v296
  %489 = vmatprep.subr.bf16.mxu0 0
  %490 = vmatpush1.bf16.msra.mxu0 %v293
  %491 = vmatprep.subr.bf16.mxu0 0
  %492 = vmatpush1.bf16.msra.mxu0 %v290
  %493 = vmatprep.subr.bf16.mxu0 0
  %494 = vmatpush1.bf16.msra.mxu0 %v287
  %495 = vmatprep.subr.bf16.mxu0 0
  %496 = vmatpush2.bf16.msra.mxu0 %v332
  %497 = vmatprep.subr.bf16.mxu0 0
  %498 = vmatpush2.bf16.msra.mxu0 %v329
  %499 = vmatprep.subr.bf16.mxu0 0
  %500 = vmatpush2.bf16.msra.mxu0 %v326
  %501 = vmatprep.subr.bf16.mxu0 0
  %502 = vmatpush2.bf16.msra.mxu0 %v323
  %503 = vmatprep.subr.bf16.mxu0 0
  %504 = vmatpush2.bf16.msra.mxu0 %v320
  %505 = vmatprep.subr.bf16.mxu0 0
  %506 = vmatpush2.bf16.msra.mxu0 %v317
  %507 = vmatprep.subr.bf16.mxu0 0
  %508 = vmatpush2.bf16.msra.mxu0 %v314
  %509 = vmatprep.subr.bf16.mxu0 0
  %510 = vmatpush2.bf16.msra.mxu0 %v311
  %511 = vmatprep.mubr.bf16.mxu0 %v101
  %512 = vmatmul.mubr.bf16.gmra.mxu0 %v100
  %v513 = vpop.f32.mrf.mxu0
  %v514 = vadd.f32 %v93, %v513
  %v515 = vpop.f32.mrf.mxu0
  %v516 = vpop.f32.mrf.mxu0
  %v517 = vpop.f32.mrf.mxu0
  %518 = vdwg.mxu0
  %519 = vmatprep.subr.bf16.mxu0 0
  %520 = vmatpush1.bf16.msra.mxu0 0
  %521 = vmatprep.subr.bf16.mxu0 0
  %522 = vmatpush1.bf16.msra.mxu0 0
  %523 = vmatprep.subr.bf16.mxu0 0
  %524 = vmatpush1.bf16.msra.mxu0 0
  %525 = vmatprep.subr.bf16.mxu0 0
  %526 = vmatpush1.bf16.msra.mxu0 0
  %527 = vmatprep.subr.bf16.mxu0 0
  %528 = vmatpush1.bf16.msra.mxu0 0
  %529 = vmatprep.subr.bf16.mxu0 0
  %530 = vmatpush1.bf16.msra.mxu0 0
  %531 = vmatprep.subr.bf16.mxu0 0
  %532 = vmatpush1.bf16.msra.mxu0 %v338
  %533 = vmatprep.subr.bf16.mxu0 0
  %534 = vmatpush1.bf16.msra.mxu0 %v335
  %535 = vmatprep.subr.bf16.mxu0 0
  %536 = vmatpush2.bf16.msra.mxu0 0
  %537 = vmatprep.subr.bf16.mxu0 0
  %538 = vmatpush2.bf16.msra.mxu0 0
  %539 = vmatprep.subr.bf16.mxu0 0
  %540 = vmatpush2.bf16.msra.mxu0 0
  %541 = vmatprep.subr.bf16.mxu0 0
  %542 = vmatpush2.bf16.msra.mxu0 0
  %543 = vmatprep.subr.bf16.mxu0 0
  %544 = vmatpush2.bf16.msra.mxu0 0
  %545 = vmatprep.subr.bf16.mxu0 0
  %546 = vmatpush2.bf16.msra.mxu0 0
  %547 = vmatprep.subr.bf16.mxu0 0
  %548 = vmatpush2.bf16.msra.mxu0 0
  %549 = vmatprep.subr.bf16.mxu0 0
  %550 = vmatpush2.bf16.msra.mxu0 0
  %551 = vmatprep.mubr.bf16.mxu0 0
  %552 = vmatmul.mubr.bf16.gmra.mxu0 %v395
  %v553 = vpop.f32.mrf.mxu0
  %v554 = vadd.f32 %v514, %v553
  %v555 = vpop.f32.mrf.mxu0
  %v556 = vpop.f32.mrf.mxu0
  %v557 = vpop.f32.mrf.mxu0
  %558 = vdwg.mxu0
  %559 = vst [vmem:[%s3] sm:$0xff] %v473
  %560 = vst [vmem:[%s3 + $0x8] sm:$0xff] %v475
  %561 = vst [vmem:[%s3 + $0x10] sm:$0xff] %v554
  // Predicated region
  $region14: #{model_forward.1} parent=0 // pred_check
    _
  $region15: #{model_forward.1} parent=0 // pred_check_branch
    %563 = sbr.rel (0) target = $region17
  $region16: #{model_forward.1} parent=0 // pred_region
    _
  $region17: #{model_forward.1} parent=0 // pred_fallthru
    _
  // Predicated region
  $region18: #{model_forward.1} parent=0 // pred_check
    _
  $region19: #{model_forward.1} parent=0 // pred_check_branch
    %565 = sbr.rel (0) target = $region21
  $region20: #{model_forward.1} parent=0 // pred_region
    _
  $region21: #{model_forward.1} parent=0 // pred_fallthru
    _

</llo_original>
